<compile_context>
chip_gen: v5e
topology: v5e:2x2
jax: 0.10.0
libtpu: 0.0.40
codegen_flags: <defaults>
</compile_context>

<pallas_src>
import functools

import jax
import jax.numpy as jnp
from jax.experimental import pallas as pl
from jax.experimental.pallas import tpu as pltpu


def chebynet_kernel(x_ref, l_ref, w_ref, o_ref, yk_ref, *, K, Cin, BB, N):
    # x_ref : (N, BB*Cin)      f32   features for this batch tile, batch folded in lanes
    # l_ref : (N, N)           bf16  graph Laplacian (grid-invariant, pre-cast)
    # w_ref : (K*Cin, Cout_p)  bf16  K fused GraphConvolution weights (grid-invariant)
    # o_ref : (BB*N, Cout_p)   bf16  batch-major output slab (lane-dense stores)
    # yk_ref: (BB*N, K*Cin)    bf16  scratch: [T_0 x | ... | T_{K-1} x], batch-major rows
    L = l_ref[...]

    def stash(k, y):
        # Relayout (N, BB*Cin) -> batch-major (BB*N, Cin) rows and park order k in the
        # scratch slab.
        # TODO(synk): replace the per-batch lane slices with a single
        #             (N, BB*Cin)->(BB*N, Cin) reshape/einshape relayout once that
        #             lowers reliably in Mosaic; it would cut this to one op per order.
        for b in range(BB):
            yk_ref[b * N:(b + 1) * N, k * Cin:(k + 1) * Cin] = (
                y[:, b * Cin:(b + 1) * Cin].astype(jnp.bfloat16))

    # Chebyshev recurrence on the propagated features; only two f32 carries stay live,
    # MXU operands are bf16, accumulation / subtraction stay f32.
    y_prev = x_ref[...]                                   # y_0 = T_0 @ x = x
    stash(0, y_prev)
    if K > 1:
        y_cur = jnp.dot(L, y_prev.astype(jnp.bfloat16),
                        preferred_element_type=jnp.float32)
        stash(1, y_cur)
        for k in range(2, K):
            y_next = 2.0 * jnp.dot(L, y_cur.astype(jnp.bfloat16),
                                   preferred_element_type=jnp.float32) - y_prev
            stash(k, y_next)
            y_prev, y_cur = y_cur, y_next

    # One fused (K*Cin)-contraction weight matmul for the whole batch tile, then ReLU.
    acc = jnp.dot(yk_ref[...], w_ref[...], preferred_element_type=jnp.float32)
    o_ref[...] = jnp.maximum(acc, 0.0).astype(o_ref.dtype)   # full 128-lane-dense store


def _pick_batch_tile(B, N, Cin, target_lanes=512):
    """Batch-tile heuristic: lane-aligned RHS width (>=128, ideally 256-512 lanes) for
    the L-propagation matmul, preferring a grid of length >= 2 so x/out DMAs pipeline
    and megacore can shard.  Falls back to the full batch for tiny problems
    (B*Cin < 128), which is lane-sparse but still correct."""
    def ok(bb):
        return B % bb == 0 and (bb * Cin) % 128 == 0 and (bb * N) % 8 == 0

    cands = [bb for bb in range(1, B + 1) if ok(bb)]
    if not cands:
        return B

    def score(bb):
        lanes = bb * Cin
        return (B // bb >= 2,                    # pipelined / shardable grid first
                128 <= lanes <= target_lanes,    # MXU-saturating but VMEM-friendly
                -abs(lanes - target_lanes))      # then closest to the target width
    return max(cands, key=score)


def chebynet_forward(x, L, W, *, batch_tile=None):
    """Chebynet forward.  x: (B, N, Cin), L: (N, N), W: (K, Cin, Cout) -> (B, N, Cout)."""
    B, N, Cin = x.shape
    K, _, Cout = W.shape
    BB = _pick_batch_tile(B, N, Cin) if batch_tile is None else batch_tile
    assert B % BB == 0
    # Partial batch tiles must present lane/sublane-aligned blocks to the BlockSpecs.
    assert BB == B or ((BB * Cin) % 128 == 0 and (BB * N) % 8 == 0)
    Cout_p = ((Cout + 127) // 128) * 128

    # Layout plumbing (wrapper side, cheap / fusable with neighbours):
    #  * fold batch into the lane dim of the propagated features: (B,N,Cin) -> (N,B*Cin)
    #  * fuse the K weights along the contraction dim and pad Cout up to 128 lanes
    #  * pre-cast the grid-invariant L / W to bf16 (halves their DMA + VMEM footprint
    #    and removes the per-step in-kernel cast).
    xt = jnp.transpose(x, (1, 0, 2)).reshape(N, B * Cin).astype(jnp.float32)
    l_bf = L.astype(jnp.bfloat16)
    w_bf = jnp.pad(W.reshape(K * Cin, Cout).astype(jnp.bfloat16),
                   ((0, 0), (0, Cout_p - Cout)))

    # Explicit scoped-VMEM budget: L/W (allow 2 buffers in case single-buffering is not
    # honoured), double-buffered x/out, the y_k scratch slab, recurrence carries and the
    # f32 accumulator, plus margin.  Clamped to the chip's physical VMEM.
    slab = N * BB * Cin
    budget = (
        2 * N * N * 2                      # L, bf16
        + 2 * K * Cin * Cout_p * 2         # W, bf16
        + 2 * slab * 4                     # x, f32, double-buffered
        + 2 * BB * N * Cout_p * 2          # out, bf16, double-buffered
        + BB * N * K * Cin * 2             # y_k scratch slab, bf16
        + 3 * slab * 4                     # recurrence carries / matmul temps, f32
        + BB * N * Cout_p * 4              # f32 accumulator before ReLU/cast
    )
    vmem_limit = max(int(budget * 1.25) + (2 << 20), 32 << 20)
    try:
        vmem_cap = int(pltpu.get_tpu_info().vmem_capacity_bytes)
    except Exception:
        vmem_cap = 64 << 20                # conservative (v7x per-core capacity)
    vmem_limit = min(vmem_limit, max(vmem_cap - (8 << 20), 16 << 20))

    kernel = functools.partial(chebynet_kernel, K=K, Cin=Cin, BB=BB, N=N)

    def build(invariant_mode):
        grid_spec = pltpu.PrefetchScalarGridSpec(
            num_scalar_prefetch=0,
            grid=(B // BB,),
            in_specs=[
                pl.BlockSpec((N, BB * Cin), lambda bt: (0, bt)),
                # L and the fused weights are grid-invariant -> one buffer is enough.
                pl.BlockSpec((N, N), lambda bt: (0, 0),
                             pipeline_mode=invariant_mode),
                pl.BlockSpec((K * Cin, Cout_p), lambda bt: (0, 0),
                             pipeline_mode=invariant_mode),
            ],
            out_specs=pl.BlockSpec((BB * N, Cout_p), lambda bt: (bt, 0)),
            scratch_shapes=[pltpu.VMEM((BB * N, K * Cin), jnp.bfloat16)],
        )
        return pl.pallas_call(
            kernel,
            out_shape=jax.ShapeDtypeStruct((B * N, Cout_p), jnp.bfloat16),
            grid_spec=grid_spec,
            compiler_params=pltpu.CompilerParams(
                dimension_semantics=("parallel",),
                vmem_limit_bytes=vmem_limit),
        )

    try:
        out = build(pl.Buffered(1))(xt, l_bf, w_bf)
    except Exception:
        # pipeline_mode=pl.Buffered(1) not supported on this jax version / lowering
        # path: fall back to default (double) buffering of the invariant operands.
        out = build(None)(xt, l_bf, w_bf)

    # (B*N, Cout_p) bf16 -> (B, N, Cout) f32: the reshape is free (row-major metadata),
    # the lane-padding strip and the upcast fuse into a single cheap pass.
    return out.reshape(B, N, Cout_p)[:, :, :Cout].astype(jnp.float32)


def chebynet_reference(x, L, W):
    """Pure-JAX reference mirroring the PyTorch code exactly (all f32)."""
    K = W.shape[0]
    N = L.shape[-1]
    support = []
    for i in range(K):
        if i == 0:
            support.append(jnp.eye(N, dtype=jnp.float32))
        elif i == 1:
            support.append(L)
        else:
            support.append(2.0 * L @ support[-1] - support[-2])
    result = None
    for i in range(K):
        out = jnp.matmul(support[i], x)      # (B, N, Cin)
        out = jnp.matmul(out, W[i])          # (B, N, Cout)
        result = out if result is None else result + out
    return jax.nn.relu(result)


if __name__ == "__main__":
    # Small, Chebynet-consistent shapes.
    B, N, Cin, Cout, K = 2, 16, 8, 32, 3

    key = jax.random.PRNGKey(0)
    kx, kl, *kws = jax.random.split(key, 2 + K)

    x = jax.random.normal(kx, (B, N, Cin), dtype=jnp.float32)
    L = jax.random.normal(kl, (N, N), dtype=jnp.float32) / jnp.sqrt(N)

    # Deterministic xavier_normal_-style init for each GraphConvolution weight.
    std = (2.0 / (Cin + Cout)) ** 0.5
    W = jnp.stack(
        [std * jax.random.normal(kws[i], (Cin, Cout), dtype=jnp.float32)
         for i in range(K)],
        axis=0,
    )

    out = jax.block_until_ready(chebynet_forward(x, L, W))
    ref = chebynet_reference(x, L, W)

    assert out.shape == (B, N, Cout)
    assert out.dtype == jnp.float32
    # bf16 MXU operands + bf16 output store (f32 recurrence/accumulation) -> bf16-level
    # tolerance.
    assert jnp.allclose(out, ref, atol=5e-2, rtol=5e-2), "mismatch vs reference"

    print("KERNEL_OK")
</pallas_src>

<mosaic_0001>
module attributes {stable_mosaic.version = 11 : i64} {
  func.func @chebynet_kernel(%arg0: i32, %arg1: memref<16x16xf32, #tpu.memory_space<vmem>>, %arg2: memref<16x16xbf16, #tpu.memory_space<vmem>>, %arg3: memref<24x128xbf16, #tpu.memory_space<vmem>>, %arg4: memref<32x128xbf16, #tpu.memory_space<vmem>>, %arg5: memref<32x24xbf16, #tpu.memory_space<vmem>>) attributes {dimension_semantics = [#tpu.dimension_semantics<parallel>], iteration_bounds = array<i64: 1>, scalar_prefetch = 0 : i64, scratch_operands = 1 : i64, tpu.core_type = #tpu.core_type<tc>, window_params = [{transform_indices = @transform_0, window_bounds = array<i64: 16, 16>}, {pipeline_mode = #tpu.pipeline_mode<synchronous>, transform_indices = @transform_1, window_bounds = array<i64: 16, 16>}, {pipeline_mode = #tpu.pipeline_mode<synchronous>, transform_indices = @transform_2, window_bounds = array<i64: 24, 128>}, {transform_indices = @transform_3, window_bounds = array<i64: 32, 128>}]} {
    %c0 = arith.constant 0 : index
    %c0_0 = arith.constant 0 : index
    %0 = vector.load %arg2[%c0, %c0_0] : memref<16x16xbf16, #tpu.memory_space<vmem>>, vector<16x16xbf16>
    %c0_1 = arith.constant 0 : index
    %c0_2 = arith.constant 0 : index
    %1 = vector.load %arg1[%c0_1, %c0_2] : memref<16x16xf32, #tpu.memory_space<vmem>>, vector<16x16xf32>
    %2 = vector.extract_strided_slice %1 {offsets = [0, 0], sizes = [16, 8], strides = [1, 1]} : vector<16x16xf32> to vector<16x8xf32>
    %3 = arith.truncf %2 : vector<16x8xf32> to vector<16x8xbf16>
    %c0_3 = arith.constant 0 : index
    %c0_4 = arith.constant 0 : index
    %4 = vector.load %arg5[%c0_3, %c0_4] : memref<32x24xbf16, #tpu.memory_space<vmem>>, vector<16x8xbf16>
    tpu.vector_store %arg5[%c0_3, %c0_4], %3 {strides = array<i32>} : memref<32x24xbf16, #tpu.memory_space<vmem>>, vector<16x8xbf16>,
    %5 = vector.extract_strided_slice %1 {offsets = [0, 8], sizes = [16, 8], strides = [1, 1]} : vector<16x16xf32> to vector<16x8xf32>
    %6 = arith.truncf %5 : vector<16x8xf32> to vector<16x8xbf16>
    %c16 = arith.constant 16 : index
    %c0_5 = arith.constant 0 : index
    %7 = vector.load %arg5[%c16, %c0_5] : memref<32x24xbf16, #tpu.memory_space<vmem>>, vector<16x8xbf16>
    tpu.vector_store %arg5[%c16, %c0_5], %6 {strides = array<i32>} : memref<32x24xbf16, #tpu.memory_space<vmem>>, vector<16x8xbf16>,
    %8 = arith.truncf %1 : vector<16x16xf32> to vector<16x16xbf16>
    %cst = arith.constant dense<0.000000e+00> : vector<16x16xf32>
    %9 = tpu.matmul %0, %8, %cst {dimension_numbers = #tpu.dot_dimension_numbers<[1], [0], [0], [1], [0, 0, 1, 1], [], []>} : vector<16x16xbf16>, vector<16x16xbf16>, vector<16x16xf32> -> vector<16x16xf32>
    %10 = vector.extract_strided_slice %9 {offsets = [0, 0], sizes = [16, 8], strides = [1, 1]} : vector<16x16xf32> to vector<16x8xf32>
    %11 = arith.truncf %10 : vector<16x8xf32> to vector<16x8xbf16>
    %c0_6 = arith.constant 0 : index
    %c8 = arith.constant 8 : index
    %12 = vector.load %arg5[%c0_6, %c8] : memref<32x24xbf16, #tpu.memory_space<vmem>>, vector<16x8xbf16>
    tpu.vector_store %arg5[%c0_6, %c8], %11 {strides = array<i32>} : memref<32x24xbf16, #tpu.memory_space<vmem>>, vector<16x8xbf16>,
    %13 = vector.extract_strided_slice %9 {offsets = [0, 8], sizes = [16, 8], strides = [1, 1]} : vector<16x16xf32> to vector<16x8xf32>
    %14 = arith.truncf %13 : vector<16x8xf32> to vector<16x8xbf16>
    %c16_7 = arith.constant 16 : index
    %c8_8 = arith.constant 8 : index
    %15 = vector.load %arg5[%c16_7, %c8_8] : memref<32x24xbf16, #tpu.memory_space<vmem>>, vector<16x8xbf16>
    tpu.vector_store %arg5[%c16_7, %c8_8], %14 {strides = array<i32>} : memref<32x24xbf16, #tpu.memory_space<vmem>>, vector<16x8xbf16>,
    %16 = arith.truncf %9 : vector<16x16xf32> to vector<16x16xbf16>
    %cst_9 = arith.constant dense<0.000000e+00> : vector<16x16xf32>
    %17 = tpu.matmul %0, %16, %cst_9 {dimension_numbers = #tpu.dot_dimension_numbers<[1], [0], [0], [1], [0, 0, 1, 1], [], []>} : vector<16x16xbf16>, vector<16x16xbf16>, vector<16x16xf32> -> vector<16x16xf32>
    %cst_10 = arith.constant 2.000000e+00 : f32
    %18 = vector.broadcast %cst_10 : f32 to vector<16x16xf32>
    %19 = arith.mulf %18, %17 : vector<16x16xf32>
    %20 = arith.subf %19, %1 : vector<16x16xf32>
    %21 = vector.extract_strided_slice %20 {offsets = [0, 0], sizes = [16, 8], strides = [1, 1]} : vector<16x16xf32> to vector<16x8xf32>
    %22 = arith.truncf %21 : vector<16x8xf32> to vector<16x8xbf16>
    %c0_11 = arith.constant 0 : index
    %c16_12 = arith.constant 16 : index
    %23 = vector.load %arg5[%c0_11, %c16_12] : memref<32x24xbf16, #tpu.memory_space<vmem>>, vector<16x8xbf16>
    tpu.vector_store %arg5[%c0_11, %c16_12], %22 {strides = array<i32>} : memref<32x24xbf16, #tpu.memory_space<vmem>>, vector<16x8xbf16>,
    %24 = vector.extract_strided_slice %20 {offsets = [0, 8], sizes = [16, 8], strides = [1, 1]} : vector<16x16xf32> to vector<16x8xf32>
    %25 = arith.truncf %24 : vector<16x8xf32> to vector<16x8xbf16>
    %c16_13 = arith.constant 16 : index
    %c16_14 = arith.constant 16 : index
    %26 = vector.load %arg5[%c16_13, %c16_14] : memref<32x24xbf16, #tpu.memory_space<vmem>>, vector<16x8xbf16>
    tpu.vector_store %arg5[%c16_13, %c16_14], %25 {strides = array<i32>} : memref<32x24xbf16, #tpu.memory_space<vmem>>, vector<16x8xbf16>,
    %c0_15 = arith.constant 0 : index
    %c0_16 = arith.constant 0 : index
    %27 = vector.load %arg5[%c0_15, %c0_16] : memref<32x24xbf16, #tpu.memory_space<vmem>>, vector<32x24xbf16>
    %c0_17 = arith.constant 0 : index
    %c0_18 = arith.constant 0 : index
    %28 = vector.load %arg3[%c0_17, %c0_18] : memref<24x128xbf16, #tpu.memory_space<vmem>>, vector<24x128xbf16>
    %cst_19 = arith.constant dense<0.000000e+00> : vector<32x128xf32>
    %29 = tpu.matmul %27, %28, %cst_19 {dimension_numbers = #tpu.dot_dimension_numbers<[1], [0], [0], [1], [0, 0, 1, 1], [], []>} : vector<32x24xbf16>, vector<24x128xbf16>, vector<32x128xf32> -> vector<32x128xf32>
    %cst_20 = arith.constant 0.000000e+00 : f32
    %30 = vector.broadcast %cst_20 : f32 to vector<32x128xf32>
    %31 = arith.maximumf %29, %30 : vector<32x128xf32>
    %32 = arith.truncf %31 : vector<32x128xf32> to vector<32x128xbf16>
    %c0_21 = arith.constant 0 : index
    %c0_22 = arith.constant 0 : index
    %33 = vector.load %arg4[%c0_21, %c0_22] : memref<32x128xbf16, #tpu.memory_space<vmem>>, vector<32x128xbf16>
    tpu.vector_store %arg4[%c0_21, %c0_22], %32 {strides = array<i32>} : memref<32x128xbf16, #tpu.memory_space<vmem>>, vector<32x128xbf16>,
    return
  }
  func.func @transform_0(%arg0: i32) -> (i32, i32) {
    %c0_i32 = arith.constant 0 : i32
    %c0_i32_0 = arith.constant 0 : i32
    return %c0_i32, %arg0 : i32, i32
  }
  func.func @transform_1(%arg0: i32) -> (i32, i32) {
    %c0_i32 = arith.constant 0 : i32
    %c0_i32_0 = arith.constant 0 : i32
    %c0_i32_1 = arith.constant 0 : i32
    return %c0_i32, %c0_i32_0 : i32, i32
  }
  func.func @transform_2(%arg0: i32) -> (i32, i32) {
    %c0_i32 = arith.constant 0 : i32
    %c0_i32_0 = arith.constant 0 : i32
    %c0_i32_1 = arith.constant 0 : i32
    return %c0_i32, %c0_i32_0 : i32, i32
  }
  func.func @transform_3(%arg0: i32) -> (i32, i32) {
    %c0_i32 = arith.constant 0 : i32
    %c0_i32_0 = arith.constant 0 : i32
    return %arg0, %c0_i32 : i32, i32
  }
}

module attributes {stable_mosaic.version = 11 : i64} {
  func.func @chebynet_kernel(%arg0: i32, %arg1: memref<16x16xf32, #tpu.memory_space<vmem>>, %arg2: memref<16x16xbf16, #tpu.memory_space<vmem>>, %arg3: memref<24x128xbf16, #tpu.memory_space<vmem>>, %arg4: memref<32x128xbf16, #tpu.memory_space<vmem>>, %arg5: memref<32x24xbf16, #tpu.memory_space<vmem>>) attributes {dimension_semantics = [#tpu.dimension_semantics<parallel>], iteration_bounds = array<i64: 1>, scalar_prefetch = 0 : i64, scratch_operands = 1 : i64, tpu.core_type = #tpu.core_type<tc>, window_params = [{transform_indices = @transform_0, window_bounds = array<i64: 16, 16>}, {pipeline_mode = #tpu.pipeline_mode<synchronous>, transform_indices = @transform_1, window_bounds = array<i64: 16, 16>}, {pipeline_mode = #tpu.pipeline_mode<synchronous>, transform_indices = @transform_2, window_bounds = array<i64: 24, 128>}, {transform_indices = @transform_3, window_bounds = array<i64: 32, 128>}]} {
    %c0 = arith.constant 0 : index
    %c0_0 = arith.constant 0 : index
    %0 = vector.load %arg2[%c0, %c0_0] : memref<16x16xbf16, #tpu.memory_space<vmem>>, vector<16x16xbf16>
    %c0_1 = arith.constant 0 : index
    %c0_2 = arith.constant 0 : index
    %1 = vector.load %arg1[%c0_1, %c0_2] : memref<16x16xf32, #tpu.memory_space<vmem>>, vector<16x16xf32>
    %2 = vector.extract_strided_slice %1 {offsets = [0, 0], sizes = [16, 8], strides = [1, 1]} : vector<16x16xf32> to vector<16x8xf32>
    %3 = arith.truncf %2 : vector<16x8xf32> to vector<16x8xbf16>
    %c0_3 = arith.constant 0 : index
    %c0_4 = arith.constant 0 : index
    %4 = vector.load %arg5[%c0_3, %c0_4] : memref<32x24xbf16, #tpu.memory_space<vmem>>, vector<16x8xbf16>
    tpu.vector_store %arg5[%c0_3, %c0_4], %3 {strides = array<i32>} : memref<32x24xbf16, #tpu.memory_space<vmem>>, vector<16x8xbf16>,
    %5 = vector.extract_strided_slice %1 {offsets = [0, 8], sizes = [16, 8], strides = [1, 1]} : vector<16x16xf32> to vector<16x8xf32>
    %6 = arith.truncf %5 : vector<16x8xf32> to vector<16x8xbf16>
    %c16 = arith.constant 16 : index
    %c0_5 = arith.constant 0 : index
    %7 = vector.load %arg5[%c16, %c0_5] : memref<32x24xbf16, #tpu.memory_space<vmem>>, vector<16x8xbf16>
    tpu.vector_store %arg5[%c16, %c0_5], %6 {strides = array<i32>} : memref<32x24xbf16, #tpu.memory_space<vmem>>, vector<16x8xbf16>,
    %8 = arith.truncf %1 : vector<16x16xf32> to vector<16x16xbf16>
    %cst = arith.constant dense<0.000000e+00> : vector<16x16xf32>
    %9 = tpu.matmul %0, %8, %cst {dimension_numbers = #tpu.dot_dimension_numbers<[1], [0], [0], [1], [0, 0, 1, 1], [], []>} : vector<16x16xbf16>, vector<16x16xbf16>, vector<16x16xf32> -> vector<16x16xf32>
    %10 = vector.extract_strided_slice %9 {offsets = [0, 0], sizes = [16, 8], strides = [1, 1]} : vector<16x16xf32> to vector<16x8xf32>
    %11 = arith.truncf %10 : vector<16x8xf32> to vector<16x8xbf16>
    %c0_6 = arith.constant 0 : index
    %c8 = arith.constant 8 : index
    %12 = vector.load %arg5[%c0_6, %c8] : memref<32x24xbf16, #tpu.memory_space<vmem>>, vector<16x8xbf16>
    tpu.vector_store %arg5[%c0_6, %c8], %11 {strides = array<i32>} : memref<32x24xbf16, #tpu.memory_space<vmem>>, vector<16x8xbf16>,
    %13 = vector.extract_strided_slice %9 {offsets = [0, 8], sizes = [16, 8], strides = [1, 1]} : vector<16x16xf32> to vector<16x8xf32>
    %14 = arith.truncf %13 : vector<16x8xf32> to vector<16x8xbf16>
    %c16_7 = arith.constant 16 : index
    %c8_8 = arith.constant 8 : index
    %15 = vector.load %arg5[%c16_7, %c8_8] : memref<32x24xbf16, #tpu.memory_space<vmem>>, vector<16x8xbf16>
    tpu.vector_store %arg5[%c16_7, %c8_8], %14 {strides = array<i32>} : memref<32x24xbf16, #tpu.memory_space<vmem>>, vector<16x8xbf16>,
    %16 = arith.truncf %9 : vector<16x16xf32> to vector<16x16xbf16>
    %cst_9 = arith.constant dense<0.000000e+00> : vector<16x16xf32>
    %17 = tpu.matmul %0, %16, %cst_9 {dimension_numbers = #tpu.dot_dimension_numbers<[1], [0], [0], [1], [0, 0, 1, 1], [], []>} : vector<16x16xbf16>, vector<16x16xbf16>, vector<16x16xf32> -> vector<16x16xf32>
    %cst_10 = arith.constant 2.000000e+00 : f32
    %18 = vector.broadcast %cst_10 : f32 to vector<16x16xf32>
    %19 = arith.mulf %18, %17 : vector<16x16xf32>
    %20 = arith.subf %19, %1 : vector<16x16xf32>
    %21 = vector.extract_strided_slice %20 {offsets = [0, 0], sizes = [16, 8], strides = [1, 1]} : vector<16x16xf32> to vector<16x8xf32>
    %22 = arith.truncf %21 : vector<16x8xf32> to vector<16x8xbf16>
    %c0_11 = arith.constant 0 : index
    %c16_12 = arith.constant 16 : index
    %23 = vector.load %arg5[%c0_11, %c16_12] : memref<32x24xbf16, #tpu.memory_space<vmem>>, vector<16x8xbf16>
    tpu.vector_store %arg5[%c0_11, %c16_12], %22 {strides = array<i32>} : memref<32x24xbf16, #tpu.memory_space<vmem>>, vector<16x8xbf16>,
    %24 = vector.extract_strided_slice %20 {offsets = [0, 8], sizes = [16, 8], strides = [1, 1]} : vector<16x16xf32> to vector<16x8xf32>
    %25 = arith.truncf %24 : vector<16x8xf32> to vector<16x8xbf16>
    %c16_13 = arith.constant 16 : index
    %c16_14 = arith.constant 16 : index
    %26 = vector.load %arg5[%c16_13, %c16_14] : memref<32x24xbf16, #tpu.memory_space<vmem>>, vector<16x8xbf16>
    tpu.vector_store %arg5[%c16_13, %c16_14], %25 {strides = array<i32>} : memref<32x24xbf16, #tpu.memory_space<vmem>>, vector<16x8xbf16>,
    %c0_15 = arith.constant 0 : index
    %c0_16 = arith.constant 0 : index
    %27 = vector.load %arg5[%c0_15, %c0_16] : memref<32x24xbf16, #tpu.memory_space<vmem>>, vector<32x24xbf16>
    %c0_17 = arith.constant 0 : index
    %c0_18 = arith.constant 0 : index
    %28 = vector.load %arg3[%c0_17, %c0_18] : memref<24x128xbf16, #tpu.memory_space<vmem>>, vector<24x128xbf16>
    %cst_19 = arith.constant dense<0.000000e+00> : vector<32x128xf32>
    %29 = tpu.matmul %27, %28, %cst_19 {dimension_numbers = #tpu.dot_dimension_numbers<[1], [0], [0], [1], [0, 0, 1, 1], [], []>} : vector<32x24xbf16>, vector<24x128xbf16>, vector<32x128xf32> -> vector<32x128xf32>
    %cst_20 = arith.constant 0.000000e+00 : f32
    %30 = vector.broadcast %cst_20 : f32 to vector<32x128xf32>
    %31 = arith.maximumf %29, %30 : vector<32x128xf32>
    %32 = arith.truncf %31 : vector<32x128xf32> to vector<32x128xbf16>
    %c0_21 = arith.constant 0 : index
    %c0_22 = arith.constant 0 : index
    %33 = vector.load %arg4[%c0_21, %c0_22] : memref<32x128xbf16, #tpu.memory_space<vmem>>, vector<32x128xbf16>
    tpu.vector_store %arg4[%c0_21, %c0_22], %32 {strides = array<i32>} : memref<32x128xbf16, #tpu.memory_space<vmem>>, vector<32x128xbf16>,
    return
  }
  func.func @transform_0(%arg0: i32) -> (i32, i32) {
    %c0_i32 = arith.constant 0 : i32
    %c0_i32_0 = arith.constant 0 : i32
    return %c0_i32, %arg0 : i32, i32
  }
  func.func @transform_1(%arg0: i32) -> (i32, i32) {
    %c0_i32 = arith.constant 0 : i32
    %c0_i32_0 = arith.constant 0 : i32
    %c0_i32_1 = arith.constant 0 : i32
    return %c0_i32, %c0_i32_0 : i32, i32
  }
  func.func @transform_2(%arg0: i32) -> (i32, i32) {
    %c0_i32 = arith.constant 0 : i32
    %c0_i32_0 = arith.constant 0 : i32
    %c0_i32_1 = arith.constant 0 : i32
    return %c0_i32, %c0_i32_0 : i32, i32
  }
  func.func @transform_3(%arg0: i32) -> (i32, i32) {
    %c0_i32 = arith.constant 0 : i32
    %c0_i32_0 = arith.constant 0 : i32
    return %arg0, %c0_i32 : i32, i32
  }
}

</mosaic_0001>

<llo_original>
// kernel: tpu_custom_call.1
$region0: #{tpu_custom_call.1}
  #allocation0 [shape = 'u32[]', space=smem, size = 0x4, offset = 0x4, fixed_abs, tag = 'smem constant byte address 0x4 - core index']
  #allocation1 [shape = 'u32[72,128]{1,0:T(1,128)}', space=vmem, size = 0x9000, scoped, tag = 'internal scratch']
  #allocation2 [shape = 'bf16[32,24]{1,0:T(8,128)(2,1)}', space=vmem, size = 0x2000, scoped, tag = 'scratch operand']
  %s0 = inlined_call_operand.hbm [shape: f32[16,16], index: 0, kind: input, shape index: {}]
  %s1 = inlined_call_operand.hbm [shape: bf16[16,16], index: 1, kind: input, shape index: {}]
  %s2 = inlined_call_operand.hbm [shape: bf16[24,128], index: 2, kind: input, shape index: {}]
  %s3 = inlined_call_operand.hbm [shape: bf16[32,128], index: 3, kind: output, shape index: {}]
  %s4 = sld [smem:[#allocation0]]
  $region34: #{tpu_custom_call.1} parent=0
    _
  %s6 = ssub.s32 1, %s4
  %s7 = scalar_select 0, %s6, %s4
  $region1: #{tpu_custom_call.1} parent=0
    #allocation3 [shape = 'u8[8192]{0}', space=vmem, size = 0x2000, scoped, tag = 'input window, operand 0, single buffered']
    #allocation4 [shape = 's32[1]{0}', space=sflag, size = 0x4, scoped, tag = 'scoped memory for tpu_custom_call.1']
    #allocation5 [shape = 's32[1]{0}', space=sflag, size = 0x4, scoped, tag = 'scoped memory for tpu_custom_call.1']
    #allocation6 [shape = 'u8[4096]{0}', space=vmem, size = 0x1000, scoped, tag = 'input window, operand 1, single buffered']
    #allocation7 [shape = 's32[1]{0}', space=sflag, size = 0x4, scoped, tag = 'scoped memory for tpu_custom_call.1']
    #allocation8 [shape = 'u8[6144]{0}', space=vmem, size = 0x1800, scoped, tag = 'input window, operand 2, single buffered']
    #allocation9 [shape = 'u8[8192]{0}', space=vmem, size = 0x2000, scoped, tag = 'output window, operand 0, single buffered']
    %8 = vsyncpa [#allocation4], 0
    %9 = vsyncpa [#allocation7], 0
    %10 = vsyncpa [#allocation5], 0
    // Predicated region
    $region2: #{tpu_custom_call.1} parent=1 // pred_check
      _
    $region3: #{tpu_custom_call.1} parent=1 // pred_check_branch
      %12 = sbr.rel (0) target = $region5
    $region4: #{tpu_custom_call.1} parent=1 // pred_region
      %14 = vsyncadd [#allocation4], 0
      %s15 = sshll.u32 %s0, 4
      %s16 = int_to_ptr.hbm [resolvable:$true] %s15
      %s17 = sshll.u32 [#allocation3], 4
      %s18 = int_to_ptr.vmem [resolvable:$true] %s17
      %23 = dma.hbm_to_vmem [thread:$0]  %s16, 256, %s18, [#allocation4], 128, 128, 8
    $region5: #{tpu_custom_call.1} parent=1 // pred_fallthru
      _
    // Predicated region
    $region6: #{tpu_custom_call.1} parent=1 // pred_check
      _
    $region7: #{tpu_custom_call.1} parent=1 // pred_check_branch
      %25 = sbr.rel (0) target = $region9
    $region8: #{tpu_custom_call.1} parent=1 // pred_region
      %27 = vsyncadd [#allocation7], 0
      %s28 = sshll.u32 %s1, 4
      %s29 = int_to_ptr.hbm [resolvable:$true] %s28
      %s30 = sshll.u32 [#allocation6], 4
      %s31 = int_to_ptr.vmem [resolvable:$true] %s30
      %36 = dma.hbm_to_vmem [thread:$0]  %s29, 128, %s31, [#allocation7], 64, 64, 4
    $region9: #{tpu_custom_call.1} parent=1 // pred_fallthru
      _
    // Predicated region
    $region10: #{tpu_custom_call.1} parent=1 // pred_check
      _
    $region11: #{tpu_custom_call.1} parent=1 // pred_check_branch
      %38 = sbr.rel (0) target = $region13
    $region12: #{tpu_custom_call.1} parent=1 // pred_region
      %40 = vsyncadd [#allocation7], 0
      %s41 = sshll.u32 %s2, 4
      %s42 = int_to_ptr.hbm [resolvable:$true] %s41
      %s43 = sshll.u32 [#allocation8], 4
      %s44 = int_to_ptr.vmem [resolvable:$true] %s43
      %49 = dma.hbm_to_vmem [thread:$0]  %s42, 192, %s44, [#allocation7], 64, 64, 4
    $region13: #{tpu_custom_call.1} parent=1 // pred_fallthru
      _
    // Predicated region
    $region14: #{tpu_custom_call.1} parent=1 // pred_check
      _
    $region15: #{tpu_custom_call.1} parent=1 // pred_check_branch
      %51 = sbr.rel (0) target = $region17
    $region16: #{tpu_custom_call.1} parent=1 // pred_region
      %53 = dma.done [#allocation4], 256
    $region17: #{tpu_custom_call.1} parent=1 // pred_fallthru
      _
    // Predicated region
    $region18: #{tpu_custom_call.1} parent=1 // pred_check
      _
    $region19: #{tpu_custom_call.1} parent=1 // pred_check_branch
      %55 = sbr.rel (0) target = $region21
    $region20: #{tpu_custom_call.1} parent=1 // pred_region
      %57 = dma.done [#allocation7], 128
    $region21: #{tpu_custom_call.1} parent=1 // pred_fallthru
      _
    // Predicated region
    $region22: #{tpu_custom_call.1} parent=1 // pred_check
      _
    $region23: #{tpu_custom_call.1} parent=1 // pred_check_branch
      %59 = sbr.rel (0) target = $region25
    $region24: #{tpu_custom_call.1} parent=1 // pred_region
      %61 = dma.done [#allocation7], 192
    $region25: #{tpu_custom_call.1} parent=1 // pred_fallthru
      _
    %v63 = vld [vmem:[#allocation6] sm:$0xf]
    %v64 = vld [vmem:[#allocation6 + $0x4] sm:$0xf]
    %v65 = vld [vmem:[#allocation3] sm:$0xff]
    %v66 = vld [vmem:[#allocation3 + $0x8] sm:$0xff]
    %v67 = vpack.c.bf16 %v65, %v65
    %v68 = vpack.c.bf16 %v66, %v66
    %vm69 = vcmask 60416
    %70 = vst.msk [vmem:[#allocation2] sm:$0xf] %vm69, %v67
    %71 = vst.msk [vmem:[#allocation2 + $0x4] sm:$0xf] %vm69, %v68
    %74 = vrot.lane.b32.xlu0 %v67, 120
    %v75 = vpop.permute.xlu0 %74
    %76 = vrot.lane.b32.xlu0 %v68, 120
    %v77 = vpop.permute.xlu0 %76
    %80 = vst.msk [vmem:[#allocation2 + $0x8] sm:$0xf] %vm69, %v75
    %81 = vst.msk [vmem:[#allocation2 + $0xc] sm:$0xf] %vm69, %v77
    %v82 = vpack.c.bf16 %v66, %v65
    %v85 = vunpack.c.l.b16 %v63
    %v86 = vunpack.c.l.b16 %v64
    %v87 = vpack.c.b16 %v86, %v85
    %vm88 = vcmask 130048
    %v90 = vsel %vm88, %v87, 0
    %92 = vmatpush.bf16.msra.mxu0 0
    %93 = vmatpush.bf16.msra.mxu0 0
    %94 = vmatpush.bf16.msra.mxu0 0
    %95 = vmatpush.bf16.msra.mxu0 0
    %96 = vmatpush.bf16.msra.mxu0 0
    %97 = vmatpush.bf16.msra.mxu0 0
    %98 = vmatpush.bf16.msra.mxu0 0
    %99 = vmatpush.bf16.msra.mxu0 %v82
    %100 = vmatmul.bf16.gmra.mxu0 %v90
    %v101 = vpop.f32.mrf.mxu0
    %v102 = vadd.f32 0.0, %v101
    %v103 = vpop.f32.mrf.mxu0
    %v104 = vadd.f32 0.0, %v103
    %105 = vdwg.mxu0
    %v106 = vpack.c.bf16 %v102, %v102
    %v107 = vpack.c.bf16 %v104, %v104
    %110 = vrot.lane.b32.xlu0 %v106, 8
    %v111 = vpop.permute.xlu0 %110
    %112 = vrot.lane.b32.xlu0 %v107, 8
    %v113 = vpop.permute.xlu0 %112
    %vm116 = vcmask 126016
    %117 = vst.msk [vmem:[#allocation2] sm:$0xf] %vm116, %v111
    %118 = vst.msk [vmem:[#allocation2 + $0x4] sm:$0xf] %vm116, %v113
    %119 = vst.msk [vmem:[#allocation2 + $0x8] sm:$0xf] %vm116, %v106
    %120 = vst.msk [vmem:[#allocation2 + $0xc] sm:$0xf] %vm116, %v107
    %v121 = vpack.c.bf16 %v104, %v102
    %122 = vmatpush.bf16.msra.mxu0 0
    %123 = vmatpush.bf16.msra.mxu0 0
    %124 = vmatpush.bf16.msra.mxu0 0
    %125 = vmatpush.bf16.msra.mxu0 0
    %126 = vmatpush.bf16.msra.mxu0 0
    %127 = vmatpush.bf16.msra.mxu0 0
    %128 = vmatpush.bf16.msra.mxu0 0
    %129 = vmatpush.bf16.msra.mxu0 %v121
    %130 = vmatmul.bf16.gmra.mxu0 %v90
    %v131 = vpop.f32.mrf.mxu0
    %v132 = vadd.f32 0.0, %v131
    %v133 = vpop.f32.mrf.mxu0
    %v134 = vadd.f32 0.0, %v133
    %135 = vdwg.mxu0
    %v136 = vmul.f32 %v132, 2.0
    %v137 = vmul.f32 %v134, 2.0
    %v138 = vsub.f32 %v136, %v65
    %v139 = vsub.f32 %v137, %v66
    %v140 = vpack.c.bf16 %v138, %v138
    %v141 = vpack.c.bf16 %v139, %v139
    %144 = vrot.lane.b32.xlu0 %v140, 16
    %v145 = vpop.permute.xlu0 %144
    %146 = vrot.lane.b32.xlu0 %v141, 16
    %v147 = vpop.permute.xlu0 %146
    %vm150 = vcmask 191616
    %151 = vst.msk [vmem:[#allocation2] sm:$0xf] %vm150, %v145
    %152 = vst.msk [vmem:[#allocation2 + $0x4] sm:$0xf] %vm150, %v147
    %153 = vrot.lane.b32.xlu0 %v140, 8
    %v154 = vpop.permute.xlu0 %153
    %155 = vrot.lane.b32.xlu0 %v141, 8
    %v156 = vpop.permute.xlu0 %155
    %159 = vst.msk [vmem:[#allocation2 + $0x8] sm:$0xf] %vm150, %v154
    %160 = vst.msk [vmem:[#allocation2 + $0xc] sm:$0xf] %vm150, %v156
    %v161 = vld [vmem:[#allocation2] sm:$0xf]
    %v162 = vld [vmem:[#allocation2 + $0x4] sm:$0xf]
    %v163 = vld [vmem:[#allocation2 + $0x8] sm:$0xf]
    %v164 = vld [vmem:[#allocation2 + $0xc] sm:$0xf]
    %v165 = vld [vmem:[#allocation8] sm:$0xf]
    %v166 = vld [vmem:[#allocation8 + $0x4] sm:$0xf]
    %v167 = vld [vmem:[#allocation8 + $0x8] sm:$0xf]
    %v172 = vunpack.c.l.b16 %v161
    %v173 = vunpack.c.l.b16 %v162
    %v174 = vunpack.c.l.b16 %v163
    %v175 = vunpack.c.l.b16 %v164
    %v176 = vpack.c.b16 %v173, %v172
    %v177 = vpack.c.b16 %v175, %v174
    %v181 = vunpack.c.l.b16 %v165
    %v182 = vunpack.c.l.b16 %v166
    %v183 = vunpack.c.l.b16 %v167
    %v184 = vpack.c.b16 %v182, %v181
    %v185 = vpack.c.b16 %v183, %v183
    %vm187 = vcmask 195584
    %v189 = vsel %vm187, %v176, 0
    %v192 = vsel %vm187, %v177, 0
    %vm194 = vcmask 1043456
    %v196 = vsel %vm194, %v185, 0
    %198 = vmatpush.bf16.msra.mxu0 0
    %199 = vmatpush.bf16.msra.mxu0 0
    %200 = vmatpush.bf16.msra.mxu0 0
    %201 = vmatpush.bf16.msra.mxu0 0
    %202 = vmatpush.bf16.msra.mxu0 0
    %203 = vmatpush.bf16.msra.mxu0 0
    %204 = vmatpush.bf16.msra.mxu0 %v196
    %205 = vmatpush.bf16.msra.mxu0 %v184
    %206 = vmatmul.bf16.gmra.mxu0 %v189
    %v207 = vpop.f32.mrf.mxu0
    %v208 = vadd.f32 0.0, %v207
    %v209 = vpop.f32.mrf.mxu0
    %v210 = vadd.f32 0.0, %v209
    %211 = vmatmul.bf16.gmra.mxu0 %v192
    %v212 = vpop.f32.mrf.mxu0
    %v213 = vadd.f32 0.0, %v212
    %v214 = vpop.f32.mrf.mxu0
    %v215 = vadd.f32 0.0, %v214
    %216 = vdwg.mxu0
    %v217 = vmax.f32 %v208, 0.0
    %v218 = vmax.f32 %v210, 0.0
    %v219 = vmax.f32 %v213, 0.0
    %v220 = vmax.f32 %v215, 0.0
    %v221 = vpack.c.bf16 %v217, %v217
    %v222 = vpack.c.bf16 %v218, %v218
    %v223 = vpack.c.bf16 %v219, %v219
    %v224 = vpack.c.bf16 %v220, %v220
    %225 = vst [vmem:[#allocation9] sm:$0xf] %v221
    %226 = vst [vmem:[#allocation9 + $0x4] sm:$0xf] %v222
    %227 = vst [vmem:[#allocation9 + $0x8] sm:$0xf] %v223
    %228 = vst [vmem:[#allocation9 + $0xc] sm:$0xf] %v224
    // Predicated region
    $region26: #{tpu_custom_call.1} parent=1 // pred_check
      _
    $region27: #{tpu_custom_call.1} parent=1 // pred_check_branch
      %230 = sbr.rel (0) target = $region29
    $region28: #{tpu_custom_call.1} parent=1 // pred_region
      %232 = vsyncadd [#allocation5], 0
      %s233 = sshll.u32 [#allocation9], 4
      %s234 = int_to_ptr.vmem [resolvable:$true] %s233
      %s235 = sshll.u32 %s3, 4
      %s236 = int_to_ptr.hbm [resolvable:$true] %s235
      %241 = dma.vmem_to_hbm [thread:$0]  %s234, 256, %s236, [#allocation5], 64, 64, 4
    $region29: #{tpu_custom_call.1} parent=1 // pred_fallthru
      _
    // Predicated region
    $region30: #{tpu_custom_call.1} parent=1 // pred_check
      _
    $region31: #{tpu_custom_call.1} parent=1 // pred_check_branch
      %243 = sbr.rel (0) target = $region33
    $region32: #{tpu_custom_call.1} parent=1 // pred_region
      %245 = dma.done [#allocation5], 256
    $region33: #{tpu_custom_call.1} parent=1 // pred_fallthru
      _
    %246 = vsyncpa [#allocation4], 1
    %247 = vsyncpa [#allocation7], 1
    %248 = vsyncpa [#allocation5], 1

// kernel: tpu_custom_call.1
$region0: #{tpu_custom_call.1}
  #allocation0 [shape = 'u32[]', space=smem, size = 0x4, offset = 0x4, fixed_abs, tag = 'smem constant byte address 0x4 - core index']
  #allocation1 [shape = 'u32[72,128]{1,0:T(1,128)}', space=vmem, size = 0x9000, scoped, tag = 'internal scratch']
  #allocation2 [shape = 'bf16[32,24]{1,0:T(8,128)(2,1)}', space=vmem, size = 0x2000, scoped, tag = 'scratch operand']
  %s0 = inlined_call_operand.hbm [shape: f32[16,16], index: 0, kind: input, shape index: {}]
  %s1 = inlined_call_operand.hbm [shape: bf16[16,16], index: 1, kind: input, shape index: {}]
  %s2 = inlined_call_operand.hbm [shape: bf16[24,128], index: 2, kind: input, shape index: {}]
  %s3 = inlined_call_operand.hbm [shape: bf16[32,128], index: 3, kind: output, shape index: {}]
  %s4 = sld [smem:[#allocation0]]
  $region34: #{tpu_custom_call.1} parent=0
    _
  %s6 = ssub.s32 1, %s4
  %s7 = scalar_select 0, %s6, %s4
  $region1: #{tpu_custom_call.1} parent=0
    #allocation3 [shape = 'u8[8192]{0}', space=vmem, size = 0x2000, scoped, tag = 'input window, operand 0, single buffered']
    #allocation4 [shape = 's32[1]{0}', space=sflag, size = 0x4, scoped, tag = 'scoped memory for tpu_custom_call.1']
    #allocation5 [shape = 's32[1]{0}', space=sflag, size = 0x4, scoped, tag = 'scoped memory for tpu_custom_call.1']
    #allocation6 [shape = 'u8[4096]{0}', space=vmem, size = 0x1000, scoped, tag = 'input window, operand 1, single buffered']
    #allocation7 [shape = 's32[1]{0}', space=sflag, size = 0x4, scoped, tag = 'scoped memory for tpu_custom_call.1']
    #allocation8 [shape = 'u8[6144]{0}', space=vmem, size = 0x1800, scoped, tag = 'input window, operand 2, single buffered']
    #allocation9 [shape = 'u8[8192]{0}', space=vmem, size = 0x2000, scoped, tag = 'output window, operand 0, single buffered']
    %8 = vsyncpa [#allocation4], 0
    %9 = vsyncpa [#allocation7], 0
    %10 = vsyncpa [#allocation5], 0
    // Predicated region
    $region2: #{tpu_custom_call.1} parent=1 // pred_check
      _
    $region3: #{tpu_custom_call.1} parent=1 // pred_check_branch
      %12 = sbr.rel (0) target = $region5
    $region4: #{tpu_custom_call.1} parent=1 // pred_region
      %14 = vsyncadd [#allocation4], 0
      %s15 = sshll.u32 %s0, 4
      %s16 = int_to_ptr.hbm [resolvable:$true] %s15
      %s17 = sshll.u32 [#allocation3], 4
      %s18 = int_to_ptr.vmem [resolvable:$true] %s17
      %23 = dma.hbm_to_vmem [thread:$0]  %s16, 256, %s18, [#allocation4], 128, 128, 8
    $region5: #{tpu_custom_call.1} parent=1 // pred_fallthru
      _
    // Predicated region
    $region6: #{tpu_custom_call.1} parent=1 // pred_check
      _
    $region7: #{tpu_custom_call.1} parent=1 // pred_check_branch
      %25 = sbr.rel (0) target = $region9
    $region8: #{tpu_custom_call.1} parent=1 // pred_region
      %27 = vsyncadd [#allocation7], 0
      %s28 = sshll.u32 %s1, 4
      %s29 = int_to_ptr.hbm [resolvable:$true] %s28
      %s30 = sshll.u32 [#allocation6], 4
      %s31 = int_to_ptr.vmem [resolvable:$true] %s30
      %36 = dma.hbm_to_vmem [thread:$0]  %s29, 128, %s31, [#allocation7], 64, 64, 4
    $region9: #{tpu_custom_call.1} parent=1 // pred_fallthru
      _
    // Predicated region
    $region10: #{tpu_custom_call.1} parent=1 // pred_check
      _
    $region11: #{tpu_custom_call.1} parent=1 // pred_check_branch
      %38 = sbr.rel (0) target = $region13
    $region12: #{tpu_custom_call.1} parent=1 // pred_region
      %40 = vsyncadd [#allocation7], 0
      %s41 = sshll.u32 %s2, 4
      %s42 = int_to_ptr.hbm [resolvable:$true] %s41
      %s43 = sshll.u32 [#allocation8], 4
      %s44 = int_to_ptr.vmem [resolvable:$true] %s43
      %49 = dma.hbm_to_vmem [thread:$0]  %s42, 192, %s44, [#allocation7], 64, 64, 4
    $region13: #{tpu_custom_call.1} parent=1 // pred_fallthru
      _
    // Predicated region
    $region14: #{tpu_custom_call.1} parent=1 // pred_check
      _
    $region15: #{tpu_custom_call.1} parent=1 // pred_check_branch
      %51 = sbr.rel (0) target = $region17
    $region16: #{tpu_custom_call.1} parent=1 // pred_region
      %53 = dma.done [#allocation4], 256
    $region17: #{tpu_custom_call.1} parent=1 // pred_fallthru
      _
    // Predicated region
    $region18: #{tpu_custom_call.1} parent=1 // pred_check
      _
    $region19: #{tpu_custom_call.1} parent=1 // pred_check_branch
      %55 = sbr.rel (0) target = $region21
    $region20: #{tpu_custom_call.1} parent=1 // pred_region
      %57 = dma.done [#allocation7], 128
    $region21: #{tpu_custom_call.1} parent=1 // pred_fallthru
      _
    // Predicated region
    $region22: #{tpu_custom_call.1} parent=1 // pred_check
      _
    $region23: #{tpu_custom_call.1} parent=1 // pred_check_branch
      %59 = sbr.rel (0) target = $region25
    $region24: #{tpu_custom_call.1} parent=1 // pred_region
      %61 = dma.done [#allocation7], 192
    $region25: #{tpu_custom_call.1} parent=1 // pred_fallthru
      _
    %v63 = vld [vmem:[#allocation6] sm:$0xf]
    %v64 = vld [vmem:[#allocation6 + $0x4] sm:$0xf]
    %v65 = vld [vmem:[#allocation3] sm:$0xff]
    %v66 = vld [vmem:[#allocation3 + $0x8] sm:$0xff]
    %v67 = vpack.c.bf16 %v65, %v65
    %v68 = vpack.c.bf16 %v66, %v66
    %vm69 = vcmask 60416
    %70 = vst.msk [vmem:[#allocation2] sm:$0xf] %vm69, %v67
    %71 = vst.msk [vmem:[#allocation2 + $0x4] sm:$0xf] %vm69, %v68
    %74 = vrot.lane.b32.xlu0 %v67, 120
    %v75 = vpop.permute.xlu0 %74
    %76 = vrot.lane.b32.xlu0 %v68, 120
    %v77 = vpop.permute.xlu0 %76
    %80 = vst.msk [vmem:[#allocation2 + $0x8] sm:$0xf] %vm69, %v75
    %81 = vst.msk [vmem:[#allocation2 + $0xc] sm:$0xf] %vm69, %v77
    %v82 = vpack.c.bf16 %v66, %v65
    %v85 = vunpack.c.l.b16 %v63
    %v86 = vunpack.c.l.b16 %v64
    %v87 = vpack.c.b16 %v86, %v85
    %vm88 = vcmask 130048
    %v90 = vsel %vm88, %v87, 0
    %92 = vmatpush.bf16.msra.mxu0 0
    %93 = vmatpush.bf16.msra.mxu0 0
    %94 = vmatpush.bf16.msra.mxu0 0
    %95 = vmatpush.bf16.msra.mxu0 0
    %96 = vmatpush.bf16.msra.mxu0 0
    %97 = vmatpush.bf16.msra.mxu0 0
    %98 = vmatpush.bf16.msra.mxu0 0
    %99 = vmatpush.bf16.msra.mxu0 %v82
    %100 = vmatmul.bf16.gmra.mxu0 %v90
    %v101 = vpop.f32.mrf.mxu0
    %v102 = vadd.f32 0.0, %v101
    %v103 = vpop.f32.mrf.mxu0
    %v104 = vadd.f32 0.0, %v103
    %105 = vdwg.mxu0
    %v106 = vpack.c.bf16 %v102, %v102
    %v107 = vpack.c.bf16 %v104, %v104
    %110 = vrot.lane.b32.xlu0 %v106, 8
    %v111 = vpop.permute.xlu0 %110
    %112 = vrot.lane.b32.xlu0 %v107, 8
    %v113 = vpop.permute.xlu0 %112
    %vm116 = vcmask 126016
    %117 = vst.msk [vmem:[#allocation2] sm:$0xf] %vm116, %v111
    %118 = vst.msk [vmem:[#allocation2 + $0x4] sm:$0xf] %vm116, %v113
    %119 = vst.msk [vmem:[#allocation2 + $0x8] sm:$0xf] %vm116, %v106
    %120 = vst.msk [vmem:[#allocation2 + $0xc] sm:$0xf] %vm116, %v107
    %v121 = vpack.c.bf16 %v104, %v102
    %122 = vmatpush.bf16.msra.mxu0 0
    %123 = vmatpush.bf16.msra.mxu0 0
    %124 = vmatpush.bf16.msra.mxu0 0
    %125 = vmatpush.bf16.msra.mxu0 0
    %126 = vmatpush.bf16.msra.mxu0 0
    %127 = vmatpush.bf16.msra.mxu0 0
    %128 = vmatpush.bf16.msra.mxu0 0
    %129 = vmatpush.bf16.msra.mxu0 %v121
    %130 = vmatmul.bf16.gmra.mxu0 %v90
    %v131 = vpop.f32.mrf.mxu0
    %v132 = vadd.f32 0.0, %v131
    %v133 = vpop.f32.mrf.mxu0
    %v134 = vadd.f32 0.0, %v133
    %135 = vdwg.mxu0
    %v136 = vmul.f32 %v132, 2.0
    %v137 = vmul.f32 %v134, 2.0
    %v138 = vsub.f32 %v136, %v65
    %v139 = vsub.f32 %v137, %v66
    %v140 = vpack.c.bf16 %v138, %v138
    %v141 = vpack.c.bf16 %v139, %v139
    %144 = vrot.lane.b32.xlu0 %v140, 16
    %v145 = vpop.permute.xlu0 %144
    %146 = vrot.lane.b32.xlu0 %v141, 16
    %v147 = vpop.permute.xlu0 %146
    %vm150 = vcmask 191616
    %151 = vst.msk [vmem:[#allocation2] sm:$0xf] %vm150, %v145
    %152 = vst.msk [vmem:[#allocation2 + $0x4] sm:$0xf] %vm150, %v147
    %153 = vrot.lane.b32.xlu0 %v140, 8
    %v154 = vpop.permute.xlu0 %153
    %155 = vrot.lane.b32.xlu0 %v141, 8
    %v156 = vpop.permute.xlu0 %155
    %159 = vst.msk [vmem:[#allocation2 + $0x8] sm:$0xf] %vm150, %v154
    %160 = vst.msk [vmem:[#allocation2 + $0xc] sm:$0xf] %vm150, %v156
    %v161 = vld [vmem:[#allocation2] sm:$0xf]
    %v162 = vld [vmem:[#allocation2 + $0x4] sm:$0xf]
    %v163 = vld [vmem:[#allocation2 + $0x8] sm:$0xf]
    %v164 = vld [vmem:[#allocation2 + $0xc] sm:$0xf]
    %v165 = vld [vmem:[#allocation8] sm:$0xf]
    %v166 = vld [vmem:[#allocation8 + $0x4] sm:$0xf]
    %v167 = vld [vmem:[#allocation8 + $0x8] sm:$0xf]
    %v172 = vunpack.c.l.b16 %v161
    %v173 = vunpack.c.l.b16 %v162
    %v174 = vunpack.c.l.b16 %v163
    %v175 = vunpack.c.l.b16 %v164
    %v176 = vpack.c.b16 %v173, %v172
    %v177 = vpack.c.b16 %v175, %v174
    %v181 = vunpack.c.l.b16 %v165
    %v182 = vunpack.c.l.b16 %v166
    %v183 = vunpack.c.l.b16 %v167
    %v184 = vpack.c.b16 %v182, %v181
    %v185 = vpack.c.b16 %v183, %v183
    %vm187 = vcmask 195584
    %v189 = vsel %vm187, %v176, 0
    %v192 = vsel %vm187, %v177, 0
    %vm194 = vcmask 1043456
    %v196 = vsel %vm194, %v185, 0
    %198 = vmatpush.bf16.msra.mxu0 0
    %199 = vmatpush.bf16.msra.mxu0 0
    %200 = vmatpush.bf16.msra.mxu0 0
    %201 = vmatpush.bf16.msra.mxu0 0
    %202 = vmatpush.bf16.msra.mxu0 0
    %203 = vmatpush.bf16.msra.mxu0 0
    %204 = vmatpush.bf16.msra.mxu0 %v196
    %205 = vmatpush.bf16.msra.mxu0 %v184
    %206 = vmatmul.bf16.gmra.mxu0 %v189
    %v207 = vpop.f32.mrf.mxu0
    %v208 = vadd.f32 0.0, %v207
    %v209 = vpop.f32.mrf.mxu0
    %v210 = vadd.f32 0.0, %v209
    %211 = vmatmul.bf16.gmra.mxu0 %v192
    %v212 = vpop.f32.mrf.mxu0
    %v213 = vadd.f32 0.0, %v212
    %v214 = vpop.f32.mrf.mxu0
    %v215 = vadd.f32 0.0, %v214
    %216 = vdwg.mxu0
    %v217 = vmax.f32 %v208, 0.0
    %v218 = vmax.f32 %v210, 0.0
    %v219 = vmax.f32 %v213, 0.0
    %v220 = vmax.f32 %v215, 0.0
    %v221 = vpack.c.bf16 %v217, %v217
    %v222 = vpack.c.bf16 %v218, %v218
    %v223 = vpack.c.bf16 %v219, %v219
    %v224 = vpack.c.bf16 %v220, %v220
    %225 = vst [vmem:[#allocation9] sm:$0xf] %v221
    %226 = vst [vmem:[#allocation9 + $0x4] sm:$0xf] %v222
    %227 = vst [vmem:[#allocation9 + $0x8] sm:$0xf] %v223
    %228 = vst [vmem:[#allocation9 + $0xc] sm:$0xf] %v224
    // Predicated region
    $region26: #{tpu_custom_call.1} parent=1 // pred_check
      _
    $region27: #{tpu_custom_call.1} parent=1 // pred_check_branch
      %230 = sbr.rel (0) target = $region29
    $region28: #{tpu_custom_call.1} parent=1 // pred_region
      %232 = vsyncadd [#allocation5], 0
      %s233 = sshll.u32 [#allocation9], 4
      %s234 = int_to_ptr.vmem [resolvable:$true] %s233
      %s235 = sshll.u32 %s3, 4
      %s236 = int_to_ptr.hbm [resolvable:$true] %s235
      %241 = dma.vmem_to_hbm [thread:$0]  %s234, 256, %s236, [#allocation5], 64, 64, 4
    $region29: #{tpu_custom_call.1} parent=1 // pred_fallthru
      _
    // Predicated region
    $region30: #{tpu_custom_call.1} parent=1 // pred_check
      _
    $region31: #{tpu_custom_call.1} parent=1 // pred_check_branch
      %243 = sbr.rel (0) target = $region33
    $region32: #{tpu_custom_call.1} parent=1 // pred_region
      %245 = dma.done [#allocation5], 256
    $region33: #{tpu_custom_call.1} parent=1 // pred_fallthru
      _
    %246 = vsyncpa [#allocation4], 1
    %247 = vsyncpa [#allocation7], 1
    %248 = vsyncpa [#allocation5], 1

</llo_original>
